<compile_context>
chip_gen: v7x
topology: tpu7x:2x2x1
jax: 0.10.0
libtpu: 0.0.40
codegen_flags: <defaults>
</compile_context>

<pallas_src>
import functools

import jax
import jax.numpy as jnp
from jax.experimental import pallas as pl
from jax.experimental.pallas import tpu as pltpu

LANE = 128


def _round_up(v: int, m: int) -> int:
    return ((v + m - 1) // m) * m


def _cdiv(a: int, b: int) -> int:
    return (a + b - 1) // b


def _vmem_budget_bytes() -> int:
    try:
        cap = int(pltpu.get_tpu_info().vmem_capacity_bytes)
    except Exception:
        cap = 64 * 1024 * 1024  # conservative: v7x physical VMEM per core
    return cap * 7 // 10        # leave headroom for compiler-internal scratch


def _varpool_kernel(x_ref, w_ref, o_ref, mean_ref, *,
                    kernel_size: int, stride: int, t_true: int,
                    oc: int, t_need: int):
    # x_ref   : (tile_r, T_pad)  full zero-padded rows, time on lanes
    # w_ref   : (t_need, oc)     banded 0/1 window selector (same for all chunks)
    # o_ref   : (tile_r, oc)     output chunk (oc % 128 == 0 -> unmasked stores)
    # mean_ref: (tile_r, 1)      per-row mean scratch, computed once per row tile
    j = pl.program_id(1)

    @pl.when(j == 0)
    def _():
        # Padded time columns are zero, so summing over T_pad equals summing
        # over the real T; divide by the true length.
        xr = x_ref[...].astype(jnp.float32)
        mean_ref[...] = jnp.sum(xr, axis=-1, keepdims=True) * (1.0 / t_true)

    # Time slice covering every window of this output chunk.  oc is a multiple
    # of 128 and stride is an integer, so the start is lane aligned.
    start = pl.multiple_of(j * (oc * stride), LANE)
    xs = x_ref[:, pl.ds(start, t_need)].astype(jnp.float32)

    # Center by the per-row mean (variance is shift invariant).
    xc = xs - mean_ref[...]

    w = w_ref[...]
    # Window sums and sums of squares via MXU matmuls sharing the resident RHS.
    s1 = jnp.dot(xc, w, preferred_element_type=jnp.float32)        # (tile_r, oc)
    s2 = jnp.dot(xc * xc, w, preferred_element_type=jnp.float32)   # (tile_r, oc)

    k = float(kernel_size)
    # kernel_size == 1: PyTorch's unbiased var is NaN; we emit log(1e-6) instead.
    inv_nm1 = 1.0 / (k - 1.0) if kernel_size > 1 else 0.0
    var = (s2 - (s1 * s1) * (1.0 / k)) * inv_nm1
    o_ref[...] = jnp.log(jnp.clip(var, 1e-6, 1e6)).astype(o_ref.dtype)


def var_poold(x: jax.Array, kernel_size: int, stride: int) -> jax.Array:
    """x: (B, C, T) -> (B, C, O) with O = (T - kernel_size)//stride + 1."""
    B, C, T = x.shape
    assert stride >= 1 and T >= kernel_size >= 1
    out_len = (T - kernel_size) // stride + 1
    R = B * C
    x2d = x.reshape(R, T)
    in_isz = jnp.dtype(x.dtype).itemsize
    out_isz = in_isz

    # ---- Output chunk width (banded selector). ----
    oc = min(512, _round_up(out_len, LANE))
    # Keep the banded selector (t_need x oc x 4B) to a few MiB even for large
    # strides.  TODO(synk): for stride >= kernel_size a gather/reshape layout
    # would avoid the zero rows entirely.
    while oc > LANE and ((oc - 1) * stride + kernel_size) * oc * 4 > (4 << 20):
        oc -= LANE
    o_pad = _round_up(out_len, oc)
    n_oc = o_pad // oc

    t_need = _round_up((oc - 1) * stride + kernel_size, LANE)
    t_pad = _round_up(max(T, (n_oc - 1) * oc * stride + t_need), LANE)

    # ---- Row tile sized from a real VMEM budget. ----
    per_row = (2 * t_pad * in_isz     # double-buffered input block
               + 2 * oc * out_isz     # double-buffered output block
               + 3 * t_need * 4       # xs / xc / xc^2 f32 intermediates
               + 3 * oc * 4           # s1 / s2 / var f32 intermediates
               + 512)                 # mean scratch row (lane padded)
    fixed = 2 * t_need * oc * 4       # selector (counted double-buffered)
    budget = _vmem_budget_bytes()
    tile_r = (budget - fixed) // per_row
    tile_r = max(8, min(1024, (tile_r // 8) * 8))
    # Keep >= 2 row-grid steps so both v7x TensorCores get work.
    tile_r = min(tile_r, _round_up(_cdiv(R, 2), 8))
    # Rebalance so padding waste stays below 8 rows per tile.
    n_rt = _cdiv(R, tile_r)
    tile_r = _round_up(_cdiv(R, n_rt), 8)
    r_pad = n_rt * tile_r

    # ---- Pad input (zeros disturb neither the row mean nor valid windows). ----
    x2d = jnp.pad(x2d, ((0, r_pad - R), (0, t_pad - T)))

    # ---- Banded selector, identical for every output chunk. ----
    t_idx = jnp.arange(t_need)[:, None]
    c_idx = jnp.arange(oc)[None, :]
    w = ((t_idx >= c_idx * stride)
         & (t_idx < c_idx * stride + kernel_size)).astype(jnp.float32)

    kern = functools.partial(_varpool_kernel, kernel_size=kernel_size,
                             stride=stride, t_true=T, oc=oc, t_need=t_need)

    out2d = pl.pallas_call(
        kern,
        out_shape=jax.ShapeDtypeStruct((r_pad, o_pad), x.dtype),
        grid=(n_rt, n_oc),
        in_specs=[
            # Full row block; index map ignores j -> DMA'd once per row tile.
            pl.BlockSpec((tile_r, t_pad), lambda i, j: (i, 0)),
            # Selector: constant index map -> stays VMEM resident.
            pl.BlockSpec((t_need, oc), lambda i, j: (0, 0)),
        ],
        out_specs=pl.BlockSpec((tile_r, oc), lambda i, j: (i, j)),
        scratch_shapes=[pltpu.VMEM((tile_r, 1), jnp.float32)],
        compiler_params=pltpu.CompilerParams(
            dimension_semantics=("parallel", "arbitrary"),
            vmem_limit_bytes=int(budget),
        ),
    )(x2d, w)

    return out2d[:R, :out_len].reshape(B, C, out_len)


def _reference(x, kernel_size, stride):
    # Pure-JAX reference mirroring the PyTorch loop (unbiased variance).
    T = x.shape[2]
    out_len = (T - kernel_size) // stride + 1
    outs = []
    for i in range(out_len):
        win = x[:, :, i * stride:i * stride + kernel_size]
        var = jnp.var(win, axis=-1, keepdims=True, ddof=1)
        outs.append(jnp.log(jnp.clip(var, 1e-6, 1e6)))
    return jnp.concatenate(outs, axis=-1)


if __name__ == "__main__":
    key = jax.random.PRNGKey(0)
    B, C, T = 2, 4, 16
    kernel_size, stride = 4, 2

    x = jax.random.normal(key, (B, C, T), dtype=jnp.float32)

    out = var_poold(x, kernel_size, stride)
    out = jax.block_until_ready(out)

    ref = _reference(x, kernel_size, stride)
    assert out.shape == ref.shape
    assert jnp.allclose(out, ref, atol=1e-4, rtol=1e-4)

    print("KERNEL_OK")
</pallas_src>

<mosaic_0001>
module attributes {stable_mosaic.version = 11 : i64} {
  func.func @_varpool_kernel(%arg0: i32, %arg1: i32, %arg2: memref<8x384xf32, #tpu.memory_space<vmem>>, %arg3: memref<384x128xf32, #tpu.memory_space<vmem>>, %arg4: memref<8x128xf32, #tpu.memory_space<vmem>>, %arg5: memref<8x1xf32, #tpu.memory_space<vmem>>) attributes {dimension_semantics = [#tpu.dimension_semantics<parallel>, #tpu.dimension_semantics<arbitrary>], iteration_bounds = array<i64: 1, 1>, scalar_prefetch = 0 : i64, scratch_operands = 1 : i64, tpu.core_type = #tpu.core_type<tc>, window_params = [{transform_indices = @transform_0, window_bounds = array<i64: 8, 384>}, {pipeline_mode = #tpu.pipeline_mode<synchronous>, transform_indices = @transform_1, window_bounds = array<i64: 384, 128>}, {transform_indices = @transform_2, window_bounds = array<i64: 8, 128>}]} {
    %c0_i32 = arith.constant 0 : i32
    %0 = arith.cmpi eq, %arg1, %c0_i32 : i32
    %1 = arith.extui %0 : i1 to i32
    %c0_i32_0 = arith.constant 0 : i32
    %2 = arith.cmpi ne, %1, %c0_i32_0 : i32
    scf.if %2 {
      %c0_12 = arith.constant 0 : index
      %c0_13 = arith.constant 0 : index
      %26 = vector.load %arg2[%c0_12, %c0_13] : memref<8x384xf32, #tpu.memory_space<vmem>>, vector<8x384xf32>
      %cst_14 = arith.constant dense<0.000000e+00> : vector<8xf32>
      %27 = vector.multi_reduction <add>, %26, %cst_14 [1] : vector<8x384xf32> to vector<8xf32>
      %28 = vector.shape_cast %27 : vector<8xf32> to vector<8x1xf32>
      %cst_15 = arith.constant 6.250000e-02 : f32
      %29 = vector.broadcast %cst_15 : f32 to vector<8x1xf32>
      %30 = arith.mulf %28, %29 : vector<8x1xf32>
      %c0_16 = arith.constant 0 : index
      %c0_17 = arith.constant 0 : index
      %31 = vector.load %arg5[%c0_16, %c0_17] : memref<8x1xf32, #tpu.memory_space<vmem>>, vector<8x1xf32>
      tpu.vector_store %arg5[%c0_16, %c0_17], %30 {strides = array<i32>} : memref<8x1xf32, #tpu.memory_space<vmem>>, vector<8x1xf32>,
    } else {
    }
    %c256_i32 = arith.constant 256 : i32
    %3 = arith.muli %arg1, %c256_i32 : i32
    %4 = tpu.assume_multiple %3, 128 : i32
    %c0 = arith.constant 0 : index
    %5 = arith.index_cast %4 : i32 to index
    %6 = vector.load %arg2[%c0, %5] : memref<8x384xf32, #tpu.memory_space<vmem>>, vector<8x384xf32>
    %c0_1 = arith.constant 0 : index
    %c0_2 = arith.constant 0 : index
    %7 = vector.load %arg5[%c0_1, %c0_2] : memref<8x1xf32, #tpu.memory_space<vmem>>, vector<8x1xf32>
    %8 = vector.broadcast %7 : vector<8x1xf32> to vector<8x384xf32>
    %9 = arith.subf %6, %8 : vector<8x384xf32>
    %c0_3 = arith.constant 0 : index
    %c0_4 = arith.constant 0 : index
    %10 = vector.load %arg3[%c0_3, %c0_4] : memref<384x128xf32, #tpu.memory_space<vmem>>, vector<384x128xf32>
    %cst = arith.constant dense<0.000000e+00> : vector<8x128xf32>
    %11 = tpu.matmul %9, %10, %cst {dimension_numbers = #tpu.dot_dimension_numbers<[1], [0], [0], [1], [0, 0, 1, 1], [], []>} : vector<8x384xf32>, vector<384x128xf32>, vector<8x128xf32> -> vector<8x128xf32>
    %12 = arith.mulf %9, %9 : vector<8x384xf32>
    %cst_5 = arith.constant dense<0.000000e+00> : vector<8x128xf32>
    %13 = tpu.matmul %12, %10, %cst_5 {dimension_numbers = #tpu.dot_dimension_numbers<[1], [0], [0], [1], [0, 0, 1, 1], [], []>} : vector<8x384xf32>, vector<384x128xf32>, vector<8x128xf32> -> vector<8x128xf32>
    %14 = arith.mulf %11, %11 : vector<8x128xf32>
    %cst_6 = arith.constant 2.500000e-01 : f32
    %15 = vector.broadcast %cst_6 : f32 to vector<8x128xf32>
    %16 = arith.mulf %14, %15 : vector<8x128xf32>
    %17 = arith.subf %13, %16 : vector<8x128xf32>
    %cst_7 = arith.constant 0.333333343 : f32
    %18 = vector.broadcast %cst_7 : f32 to vector<8x128xf32>
    %19 = arith.mulf %17, %18 : vector<8x128xf32>
    %cst_8 = arith.constant 9.99999997E-7 : f32
    %cst_9 = arith.constant 1.000000e+06 : f32
    %20 = vector.broadcast %cst_8 : f32 to vector<8x128xf32>
    %21 = arith.maximumf %20, %19 : vector<8x128xf32>
    %22 = vector.broadcast %cst_9 : f32 to vector<8x128xf32>
    %23 = arith.minimumf %22, %21 : vector<8x128xf32>
    %24 = math.log %23 : vector<8x128xf32>
    %c0_10 = arith.constant 0 : index
    %c0_11 = arith.constant 0 : index
    %25 = vector.load %arg4[%c0_10, %c0_11] : memref<8x128xf32, #tpu.memory_space<vmem>>, vector<8x128xf32>
    tpu.vector_store %arg4[%c0_10, %c0_11], %24 {strides = array<i32>} : memref<8x128xf32, #tpu.memory_space<vmem>>, vector<8x128xf32>,
    return
  }
  func.func @transform_0(%arg0: i32, %arg1: i32) -> (i32, i32) {
    %c0_i32 = arith.constant 0 : i32
    %c0_i32_0 = arith.constant 0 : i32
    return %arg0, %c0_i32 : i32, i32
  }
  func.func @transform_1(%arg0: i32, %arg1: i32) -> (i32, i32) {
    %c0_i32 = arith.constant 0 : i32
    %c0_i32_0 = arith.constant 0 : i32
    %c0_i32_1 = arith.constant 0 : i32
    return %c0_i32, %c0_i32_0 : i32, i32
  }
  func.func @transform_2(%arg0: i32, %arg1: i32) -> (i32, i32) {
    %c0_i32 = arith.constant 0 : i32
    return %arg0, %arg1 : i32, i32
  }
}

</mosaic_0001>

<llo_original>
// kernel: tpu_custom_call.1
$region0: #{tpu_custom_call.1}
  #allocation0 [shape = 'u32[]', space=smem, size = 0x4, offset = 0x4, fixed_abs, tag = 'smem constant byte address 0x4 - core index']
  #allocation1 [shape = 'u32[144,128]{1,0:T(1,128)}', space=vmem, size = 0x12000, scoped, tag = 'internal scratch']
  #allocation2 [shape = 'f32[8,1]{1,0:T(8,128)}', space=vmem, size = 0x1000, scoped, tag = 'scratch operand']
  %s0 = inlined_call_operand.hbm [shape: f32[8,384], index: 0, kind: input, shape index: {}]
  %s1 = inlined_call_operand.hbm [shape: f32[384,128], index: 1, kind: input, shape index: {}]
  %s2 = inlined_call_operand.hbm [shape: f32[8,128], index: 2, kind: output, shape index: {}]
  %s3 = sld [smem:[#allocation0]]
  $region30: #{tpu_custom_call.1} parent=0
    _
  %s5 = ssub.s32 1, %s3
  %s6 = scalar_select 0, %s5, %s3
  $region1: #{tpu_custom_call.1} parent=0
    #allocation3 [shape = 'u8[12288]{0}', space=vmem, size = 0x3000, scoped, tag = 'input window, operand 0, single buffered']
    #allocation4 [shape = 's32[1]{0}', space=sflag, size = 0x4, scoped, tag = 'scoped memory for tpu_custom_call.1']
    #allocation5 [shape = 's32[1]{0}', space=sflag, size = 0x4, scoped, tag = 'scoped memory for tpu_custom_call.1']
    #allocation6 [shape = 'u8[196608]{0}', space=vmem, size = 0x30000, scoped, tag = 'input window, operand 1, single buffered']
    #allocation7 [shape = 's32[1]{0}', space=sflag, size = 0x4, scoped, tag = 'scoped memory for tpu_custom_call.1']
    #allocation8 [shape = 'u8[4096]{0}', space=vmem, size = 0x1000, scoped, tag = 'output window, operand 0, single buffered']
    %7 = vsyncpa [#allocation4], 0
    %8 = vsyncpa [#allocation7], 0
    %9 = vsyncpa [#allocation5], 0
    // Predicated region
    $region2: #{tpu_custom_call.1} parent=1 // pred_check
      _
    $region3: #{tpu_custom_call.1} parent=1 // pred_check_branch
      %11 = sbr.rel (0) target = $region5
    $region4: #{tpu_custom_call.1} parent=1 // pred_region
      %s13 = ssub.s32 384, 384
      %14 = vsyncadd [#allocation4], %s13
      %s16 = sshll.u32 [#allocation3], 4
      %s17 = int_to_ptr.vmem [resolvable:$true] %s16
      %19 = dma.hbm_to_vmem [thread:$0]  %s0, 384, %s17, [#allocation4]
    $region5: #{tpu_custom_call.1} parent=1 // pred_fallthru
      _
    // Predicated region
    $region6: #{tpu_custom_call.1} parent=1 // pred_check
      _
    $region7: #{tpu_custom_call.1} parent=1 // pred_check_branch
      %21 = sbr.rel (0) target = $region9
    $region8: #{tpu_custom_call.1} parent=1 // pred_region
      %s23 = ssub.s32 6144, 6144
      %24 = vsyncadd [#allocation7], %s23
      %s25 = sshll.u32 [#allocation6], 4
      %s26 = int_to_ptr.vmem [resolvable:$true] %s25
      %31 = dma.hbm_to_vmem [thread:$0]  %s1, 6144, %s26, [#allocation7], 128, 128, 8
    $region9: #{tpu_custom_call.1} parent=1 // pred_fallthru
      _
    // Predicated region
    $region10: #{tpu_custom_call.1} parent=1 // pred_check
      _
    $region11: #{tpu_custom_call.1} parent=1 // pred_check_branch
      %33 = sbr.rel (0) target = $region13
    $region12: #{tpu_custom_call.1} parent=1 // pred_region
      %34 = dma.done [#allocation4], 384
    $region13: #{tpu_custom_call.1} parent=1 // pred_fallthru
      _
    // Predicated region
    $region14: #{tpu_custom_call.1} parent=1 // pred_check
      _
    $region15: #{tpu_custom_call.1} parent=1 // pred_check_branch
      %36 = sbr.rel (0) target = $region17
    $region16: #{tpu_custom_call.1} parent=1 // pred_region
      %37 = dma.done [#allocation7], 6144
    $region17: #{tpu_custom_call.1} parent=1 // pred_fallthru
      _
    %p38 = scmp.eq.s32.totalorder 0, 0
    // Predicated region
    $region18: #{tpu_custom_call.1} parent=1 // pred_check
      %p39 = pneg %p38
    $region19: #{tpu_custom_call.1} parent=1 // pred_check_branch
      %41 = sbr.rel (%p39) target = $region21
    $region20: #{tpu_custom_call.1} parent=1 // pred_region
      %v42 = vld [vmem:[#allocation3] sm:$0xff]
      %v43 = vld [vmem:[#allocation3 + $0x8] sm:$0xff]
      %v44 = vld [vmem:[#allocation3 + $0x10] sm:$0xff]
      %v45 = vadd.f32 %v42, %v43
      %v46 = vadd.f32 %v45, %v44
      %47 = vadd.xlane.f32.xlu0 %v46
      %v48 = vpop.xlane.xlu0 %47
      %v49 = vmul.f32 %v48, 0.0625
      %vm50 = vcmask 7168
      %51 = vst.msk [vmem:[#allocation2] sm:$0xff] %vm50, %v49
    $region21: #{tpu_custom_call.1} parent=1 // pred_fallthru
      _
    %s52 = smul.u32 0, 256
    %s53 = sshra.s32 %s52, 7
    %s54 = sand.u32 %s52, 127
    %s55 = smul.addr %s53, 8
    %s56 = scalar_lea.vmem [#allocation3], %s55
    %v57 = vld [vmem:[%s56] sm:$0xff]
    %v58 = vld [vmem:[%s56 + $0x8] sm:$0xff]
    %v59 = vld [vmem:[%s56 + $0x10] sm:$0xff]
    %v60 = vld [vmem:[#allocation2] sm:$0xff]
    %62 = vset.pattern.permute.xlu0 0
    %63 = vperm.xlu0 %62, %v60
    %v64 = vpop.permute.xlu0 %63
    %v66 = vsub.f32 %v57, %v64
    %v67 = vsub.f32 %v58, %v64
    %v68 = vsub.f32 %v59, %v64
    %v69 = vld [vmem:[#allocation6] sm:$0xff]
    %v70 = vld [vmem:[#allocation6 + $0x8] sm:$0xff]
    %v71 = vld [vmem:[#allocation6 + $0x10] sm:$0xff]
    %v72 = vld [vmem:[#allocation6 + $0x18] sm:$0xff]
    %v73 = vld [vmem:[#allocation6 + $0x20] sm:$0xff]
    %v74 = vld [vmem:[#allocation6 + $0x28] sm:$0xff]
    %v75 = vld [vmem:[#allocation6 + $0x30] sm:$0xff]
    %v76 = vld [vmem:[#allocation6 + $0x38] sm:$0xff]
    %v77 = vld [vmem:[#allocation6 + $0x40] sm:$0xff]
    %v78 = vld [vmem:[#allocation6 + $0x48] sm:$0xff]
    %v79 = vld [vmem:[#allocation6 + $0x50] sm:$0xff]
    %v80 = vld [vmem:[#allocation6 + $0x58] sm:$0xff]
    %v81 = vld [vmem:[#allocation6 + $0x60] sm:$0xff]
    %v82 = vld [vmem:[#allocation6 + $0x68] sm:$0xff]
    %v83 = vld [vmem:[#allocation6 + $0x70] sm:$0xff]
    %v84 = vld [vmem:[#allocation6 + $0x78] sm:$0xff]
    %v85 = vld [vmem:[#allocation6 + $0x80] sm:$0xff]
    %v86 = vld [vmem:[#allocation6 + $0x88] sm:$0xff]
    %v87 = vld [vmem:[#allocation6 + $0x90] sm:$0xff]
    %v88 = vld [vmem:[#allocation6 + $0x98] sm:$0xff]
    %v89 = vld [vmem:[#allocation6 + $0xa0] sm:$0xff]
    %v90 = vld [vmem:[#allocation6 + $0xa8] sm:$0xff]
    %v91 = vld [vmem:[#allocation6 + $0xb0] sm:$0xff]
    %v92 = vld [vmem:[#allocation6 + $0xb8] sm:$0xff]
    %v93 = vld [vmem:[#allocation6 + $0xc0] sm:$0xff]
    %v94 = vld [vmem:[#allocation6 + $0xc8] sm:$0xff]
    %v95 = vld [vmem:[#allocation6 + $0xd0] sm:$0xff]
    %v96 = vld [vmem:[#allocation6 + $0xd8] sm:$0xff]
    %v97 = vld [vmem:[#allocation6 + $0xe0] sm:$0xff]
    %v98 = vld [vmem:[#allocation6 + $0xe8] sm:$0xff]
    %v99 = vld [vmem:[#allocation6 + $0xf0] sm:$0xff]
    %v100 = vld [vmem:[#allocation6 + $0xf8] sm:$0xff]
    %v101 = vld [vmem:[#allocation6 + $0x100] sm:$0xff]
    %v102 = vld [vmem:[#allocation6 + $0x108] sm:$0xff]
    %v103 = vld [vmem:[#allocation6 + $0x110] sm:$0xff]
    %v104 = vld [vmem:[#allocation6 + $0x118] sm:$0xff]
    %v105 = vld [vmem:[#allocation6 + $0x120] sm:$0xff]
    %v106 = vld [vmem:[#allocation6 + $0x128] sm:$0xff]
    %v107 = vld [vmem:[#allocation6 + $0x130] sm:$0xff]
    %v108 = vld [vmem:[#allocation6 + $0x138] sm:$0xff]
    %v109 = vld [vmem:[#allocation6 + $0x140] sm:$0xff]
    %v110 = vld [vmem:[#allocation6 + $0x148] sm:$0xff]
    %v111 = vld [vmem:[#allocation6 + $0x150] sm:$0xff]
    %v112 = vld [vmem:[#allocation6 + $0x158] sm:$0xff]
    %v113 = vld [vmem:[#allocation6 + $0x160] sm:$0xff]
    %v114 = vld [vmem:[#allocation6 + $0x168] sm:$0xff]
    %v115 = vld [vmem:[#allocation6 + $0x170] sm:$0xff]
    %v116 = vld [vmem:[#allocation6 + $0x178] sm:$0xff]
    %117 = vmatprep.subr.mxu0 0.0
    %118 = vmatpush1.msra.mxu0 %v69
    %119 = vmatprep.subr.mxu0 0.0
    %120 = vmatpush1.msra.mxu0 %v70
    %121 = vmatprep.subr.mxu0 0.0
    %122 = vmatpush1.msra.mxu0 %v71
    %123 = vmatprep.subr.mxu0 0.0
    %124 = vmatpush1.msra.mxu0 %v72
    %125 = vmatprep.subr.mxu0 0.0
    %126 = vmatpush1.msra.mxu0 %v73
    %127 = vmatprep.subr.mxu0 0.0
    %128 = vmatpush1.msra.mxu0 %v74
    %129 = vmatprep.subr.mxu0 0.0
    %130 = vmatpush1.msra.mxu0 %v75
    %131 = vmatprep.subr.mxu0 0.0
    %132 = vmatpush1.msra.mxu0 %v76
    %133 = vmatprep.subr.mxu0 0.0
    %134 = vmatpush1.msra.mxu0 %v77
    %135 = vmatprep.subr.mxu0 0.0
    %136 = vmatpush1.msra.mxu0 %v78
    %137 = vmatprep.subr.mxu0 0.0
    %138 = vmatpush1.msra.mxu0 %v79
    %139 = vmatprep.subr.mxu0 0.0
    %140 = vmatpush1.msra.mxu0 %v80
    %141 = vmatprep.subr.mxu0 0.0
    %142 = vmatpush1.msra.mxu0 %v81
    %143 = vmatprep.subr.mxu0 0.0
    %144 = vmatpush1.msra.mxu0 %v82
    %145 = vmatprep.subr.mxu0 0.0
    %146 = vmatpush1.msra.mxu0 %v83
    %147 = vmatprep.subr.mxu0 0.0
    %148 = vmatpush1.msra.mxu0 %v84
    %149 = vmatprep.subr.mxu0 0.0
    %150 = vmatpush1.msra.mxu0 %v85
    %151 = vmatprep.subr.mxu0 0.0
    %152 = vmatpush1.msra.mxu0 %v86
    %153 = vmatprep.subr.mxu0 0.0
    %154 = vmatpush1.msra.mxu0 %v87
    %155 = vmatprep.subr.mxu0 0.0
    %156 = vmatpush1.msra.mxu0 %v88
    %157 = vmatprep.subr.mxu0 0.0
    %158 = vmatpush1.msra.mxu0 %v89
    %159 = vmatprep.subr.mxu0 0.0
    %160 = vmatpush1.msra.mxu0 %v90
    %161 = vmatprep.subr.mxu0 0.0
    %162 = vmatpush1.msra.mxu0 %v91
    %163 = vmatprep.subr.mxu0 0.0
    %164 = vmatpush1.msra.mxu0 %v92
    %165 = vmatprep.subr.mxu0 0.0
    %166 = vmatpush1.msra.mxu0 %v93
    %167 = vmatprep.subr.mxu0 0.0
    %168 = vmatpush1.msra.mxu0 %v94
    %169 = vmatprep.subr.mxu0 0.0
    %170 = vmatpush1.msra.mxu0 %v95
    %171 = vmatprep.subr.mxu0 0.0
    %172 = vmatpush1.msra.mxu0 %v96
    %173 = vmatprep.subr.mxu0 0.0
    %174 = vmatpush1.msra.mxu0 %v97
    %175 = vmatprep.subr.mxu0 0.0
    %176 = vmatpush1.msra.mxu0 %v98
    %177 = vmatprep.subr.mxu0 0.0
    %178 = vmatpush1.msra.mxu0 %v99
    %179 = vmatprep.subr.mxu0 0.0
    %180 = vmatpush1.msra.mxu0 %v100
    %181 = vmatprep.mubr.f32.mxu0 %v67
    %182 = vmatmul.mubr.f32.gmra.mrb[0].mxu0 %v66
    %v183 = vpop.f32.mrb[0].mxu0
    %v184 = vadd.f32 0.0, %v183
    %v185 = vpop.f32.mrb[0].mxu0
    %186 = vdwg.mxu0
    %187 = vmatprep.subr.mxu0 0.0
    %188 = vmatpush1.msra.mxu0 %v101
    %189 = vmatprep.subr.mxu0 0.0
    %190 = vmatpush1.msra.mxu0 %v102
    %191 = vmatprep.subr.mxu0 0.0
    %192 = vmatpush1.msra.mxu0 %v103
    %193 = vmatprep.subr.mxu0 0.0
    %194 = vmatpush1.msra.mxu0 %v104
    %195 = vmatprep.subr.mxu0 0.0
    %196 = vmatpush1.msra.mxu0 %v105
    %197 = vmatprep.subr.mxu0 0.0
    %198 = vmatpush1.msra.mxu0 %v106
    %199 = vmatprep.subr.mxu0 0.0
    %200 = vmatpush1.msra.mxu0 %v107
    %201 = vmatprep.subr.mxu0 0.0
    %202 = vmatpush1.msra.mxu0 %v108
    %203 = vmatprep.subr.mxu0 0.0
    %204 = vmatpush1.msra.mxu0 %v109
    %205 = vmatprep.subr.mxu0 0.0
    %206 = vmatpush1.msra.mxu0 %v110
    %207 = vmatprep.subr.mxu0 0.0
    %208 = vmatpush1.msra.mxu0 %v111
    %209 = vmatprep.subr.mxu0 0.0
    %210 = vmatpush1.msra.mxu0 %v112
    %211 = vmatprep.subr.mxu0 0.0
    %212 = vmatpush1.msra.mxu0 %v113
    %213 = vmatprep.subr.mxu0 0.0
    %214 = vmatpush1.msra.mxu0 %v114
    %215 = vmatprep.subr.mxu0 0.0
    %216 = vmatpush1.msra.mxu0 %v115
    %217 = vmatprep.subr.mxu0 0.0
    %218 = vmatpush1.msra.mxu0 %v116
    %219 = vmatprep.subr.mxu0 0.0
    %220 = vmatpush1.msra.mxu0 0.0
    %221 = vmatprep.subr.mxu0 0.0
    %222 = vmatpush1.msra.mxu0 0.0
    %223 = vmatprep.subr.mxu0 0.0
    %224 = vmatpush1.msra.mxu0 0.0
    %225 = vmatprep.subr.mxu0 0.0
    %226 = vmatpush1.msra.mxu0 0.0
    %227 = vmatprep.subr.mxu0 0.0
    %228 = vmatpush1.msra.mxu0 0.0
    %229 = vmatprep.subr.mxu0 0.0
    %230 = vmatpush1.msra.mxu0 0.0
    %231 = vmatprep.subr.mxu0 0.0
    %232 = vmatpush1.msra.mxu0 0.0
    %233 = vmatprep.subr.mxu0 0.0
    %234 = vmatpush1.msra.mxu0 0.0
    %235 = vmatprep.subr.mxu0 0.0
    %236 = vmatpush1.msra.mxu0 0.0
    %237 = vmatprep.subr.mxu0 0.0
    %238 = vmatpush1.msra.mxu0 0.0
    %239 = vmatprep.subr.mxu0 0.0
    %240 = vmatpush1.msra.mxu0 0.0
    %241 = vmatprep.subr.mxu0 0.0
    %242 = vmatpush1.msra.mxu0 0.0
    %243 = vmatprep.subr.mxu0 0.0
    %244 = vmatpush1.msra.mxu0 0.0
    %245 = vmatprep.subr.mxu0 0.0
    %246 = vmatpush1.msra.mxu0 0.0
    %247 = vmatprep.subr.mxu0 0.0
    %248 = vmatpush1.msra.mxu0 0.0
    %249 = vmatprep.subr.mxu0 0.0
    %250 = vmatpush1.msra.mxu0 0.0
    %251 = vmatprep.mubr.f32.mxu0 0.0
    %252 = vmatmul.mubr.f32.gmra.mrb[0].mxu0 %v68
    %v253 = vpop.f32.mrb[0].mxu0
    %v254 = vadd.f32 %v184, %v253
    %v255 = vpop.f32.mrb[0].mxu0
    %256 = vdwg.mxu0
    %v257 = vmul.f32 %v66, %v66
    %v258 = vmul.f32 %v67, %v67
    %v259 = vmul.f32 %v68, %v68
    %260 = vmatprep.subr.mxu0 0.0
    %261 = vmatpush1.msra.mxu0 %v69
    %262 = vmatprep.subr.mxu0 0.0
    %263 = vmatpush1.msra.mxu0 %v70
    %264 = vmatprep.subr.mxu0 0.0
    %265 = vmatpush1.msra.mxu0 %v71
    %266 = vmatprep.subr.mxu0 0.0
    %267 = vmatpush1.msra.mxu0 %v72
    %268 = vmatprep.subr.mxu0 0.0
    %269 = vmatpush1.msra.mxu0 %v73
    %270 = vmatprep.subr.mxu0 0.0
    %271 = vmatpush1.msra.mxu0 %v74
    %272 = vmatprep.subr.mxu0 0.0
    %273 = vmatpush1.msra.mxu0 %v75
    %274 = vmatprep.subr.mxu0 0.0
    %275 = vmatpush1.msra.mxu0 %v76
    %276 = vmatprep.subr.mxu0 0.0
    %277 = vmatpush1.msra.mxu0 %v77
    %278 = vmatprep.subr.mxu0 0.0
    %279 = vmatpush1.msra.mxu0 %v78
    %280 = vmatprep.subr.mxu0 0.0
    %281 = vmatpush1.msra.mxu0 %v79
    %282 = vmatprep.subr.mxu0 0.0
    %283 = vmatpush1.msra.mxu0 %v80
    %284 = vmatprep.subr.mxu0 0.0
    %285 = vmatpush1.msra.mxu0 %v81
    %286 = vmatprep.subr.mxu0 0.0
    %287 = vmatpush1.msra.mxu0 %v82
    %288 = vmatprep.subr.mxu0 0.0
    %289 = vmatpush1.msra.mxu0 %v83
    %290 = vmatprep.subr.mxu0 0.0
    %291 = vmatpush1.msra.mxu0 %v84
    %292 = vmatprep.subr.mxu0 0.0
    %293 = vmatpush1.msra.mxu0 %v85
    %294 = vmatprep.subr.mxu0 0.0
    %295 = vmatpush1.msra.mxu0 %v86
    %296 = vmatprep.subr.mxu0 0.0
    %297 = vmatpush1.msra.mxu0 %v87
    %298 = vmatprep.subr.mxu0 0.0
    %299 = vmatpush1.msra.mxu0 %v88
    %300 = vmatprep.subr.mxu0 0.0
    %301 = vmatpush1.msra.mxu0 %v89
    %302 = vmatprep.subr.mxu0 0.0
    %303 = vmatpush1.msra.mxu0 %v90
    %304 = vmatprep.subr.mxu0 0.0
    %305 = vmatpush1.msra.mxu0 %v91
    %306 = vmatprep.subr.mxu0 0.0
    %307 = vmatpush1.msra.mxu0 %v92
    %308 = vmatprep.subr.mxu0 0.0
    %309 = vmatpush1.msra.mxu0 %v93
    %310 = vmatprep.subr.mxu0 0.0
    %311 = vmatpush1.msra.mxu0 %v94
    %312 = vmatprep.subr.mxu0 0.0
    %313 = vmatpush1.msra.mxu0 %v95
    %314 = vmatprep.subr.mxu0 0.0
    %315 = vmatpush1.msra.mxu0 %v96
    %316 = vmatprep.subr.mxu0 0.0
    %317 = vmatpush1.msra.mxu0 %v97
    %318 = vmatprep.subr.mxu0 0.0
    %319 = vmatpush1.msra.mxu0 %v98
    %320 = vmatprep.subr.mxu0 0.0
    %321 = vmatpush1.msra.mxu0 %v99
    %322 = vmatprep.subr.mxu0 0.0
    %323 = vmatpush1.msra.mxu0 %v100
    %324 = vmatprep.mubr.f32.mxu0 %v258
    %325 = vmatmul.mubr.f32.gmra.mrb[0].mxu0 %v257
    %v326 = vpop.f32.mrb[0].mxu0
    %v327 = vadd.f32 0.0, %v326
    %v328 = vpop.f32.mrb[0].mxu0
    %329 = vdwg.mxu0
    %330 = vmatprep.subr.mxu0 0.0
    %331 = vmatpush1.msra.mxu0 %v101
    %332 = vmatprep.subr.mxu0 0.0
    %333 = vmatpush1.msra.mxu0 %v102
    %334 = vmatprep.subr.mxu0 0.0
    %335 = vmatpush1.msra.mxu0 %v103
    %336 = vmatprep.subr.mxu0 0.0
    %337 = vmatpush1.msra.mxu0 %v104
    %338 = vmatprep.subr.mxu0 0.0
    %339 = vmatpush1.msra.mxu0 %v105
    %340 = vmatprep.subr.mxu0 0.0
    %341 = vmatpush1.msra.mxu0 %v106
    %342 = vmatprep.subr.mxu0 0.0
    %343 = vmatpush1.msra.mxu0 %v107
    %344 = vmatprep.subr.mxu0 0.0
    %345 = vmatpush1.msra.mxu0 %v108
    %346 = vmatprep.subr.mxu0 0.0
    %347 = vmatpush1.msra.mxu0 %v109
    %348 = vmatprep.subr.mxu0 0.0
    %349 = vmatpush1.msra.mxu0 %v110
    %350 = vmatprep.subr.mxu0 0.0
    %351 = vmatpush1.msra.mxu0 %v111
    %352 = vmatprep.subr.mxu0 0.0
    %353 = vmatpush1.msra.mxu0 %v112
    %354 = vmatprep.subr.mxu0 0.0
    %355 = vmatpush1.msra.mxu0 %v113
    %356 = vmatprep.subr.mxu0 0.0
    %357 = vmatpush1.msra.mxu0 %v114
    %358 = vmatprep.subr.mxu0 0.0
    %359 = vmatpush1.msra.mxu0 %v115
    %360 = vmatprep.subr.mxu0 0.0
    %361 = vmatpush1.msra.mxu0 %v116
    %362 = vmatprep.subr.mxu0 0.0
    %363 = vmatpush1.msra.mxu0 0.0
    %364 = vmatprep.subr.mxu0 0.0
    %365 = vmatpush1.msra.mxu0 0.0
    %366 = vmatprep.subr.mxu0 0.0
    %367 = vmatpush1.msra.mxu0 0.0
    %368 = vmatprep.subr.mxu0 0.0
    %369 = vmatpush1.msra.mxu0 0.0
    %370 = vmatprep.subr.mxu0 0.0
    %371 = vmatpush1.msra.mxu0 0.0
    %372 = vmatprep.subr.mxu0 0.0
    %373 = vmatpush1.msra.mxu0 0.0
    %374 = vmatprep.subr.mxu0 0.0
    %375 = vmatpush1.msra.mxu0 0.0
    %376 = vmatprep.subr.mxu0 0.0
    %377 = vmatpush1.msra.mxu0 0.0
    %378 = vmatprep.subr.mxu0 0.0
    %379 = vmatpush1.msra.mxu0 0.0
    %380 = vmatprep.subr.mxu0 0.0
    %381 = vmatpush1.msra.mxu0 0.0
    %382 = vmatprep.subr.mxu0 0.0
    %383 = vmatpush1.msra.mxu0 0.0
    %384 = vmatprep.subr.mxu0 0.0
    %385 = vmatpush1.msra.mxu0 0.0
    %386 = vmatprep.subr.mxu0 0.0
    %387 = vmatpush1.msra.mxu0 0.0
    %388 = vmatprep.subr.mxu0 0.0
    %389 = vmatpush1.msra.mxu0 0.0
    %390 = vmatprep.subr.mxu0 0.0
    %391 = vmatpush1.msra.mxu0 0.0
    %392 = vmatprep.subr.mxu0 0.0
    %393 = vmatpush1.msra.mxu0 0.0
    %394 = vmatprep.mubr.f32.mxu0 0.0
    %395 = vmatmul.mubr.f32.gmra.mrb[0].mxu0 %v259
    %v396 = vpop.f32.mrb[0].mxu0
    %v397 = vadd.f32 %v327, %v396
    %v398 = vpop.f32.mrb[0].mxu0
    %399 = vdwg.mxu0
    %v400 = vmul.f32 %v254, %v254
    %v401 = vmul.f32 %v400, 0.25
    %v402 = vsub.f32 %v397, %v401
    %v403 = vmul.f32 %v402, 0.33333334
    %v404 = vmax.f32 %v403, 1e-06
    %v405 = vmin.f32 %v404, 1000000.0
    %v406 = vlog2.pop %v405
    %v407 = vmul.f32 %v406, 0.6931472
    %408 = vst [vmem:[#allocation8] sm:$0xff] %v407
    // Predicated region
    $region22: #{tpu_custom_call.1} parent=1 // pred_check
      _
    $region23: #{tpu_custom_call.1} parent=1 // pred_check_branch
      %410 = sbr.rel (0) target = $region25
    $region24: #{tpu_custom_call.1} parent=1 // pred_region
      %s412 = ssub.s32 128, 128
      %413 = vsyncadd [#allocation5], %s412
      %s415 = sshll.u32 [#allocation8], 4
      %s416 = int_to_ptr.vmem [resolvable:$true] %s415
      %418 = dma.vmem_to_hbm [thread:$0]  %s416, 128, %s2, [#allocation5]
    $region25: #{tpu_custom_call.1} parent=1 // pred_fallthru
      _
    // Predicated region
    $region26: #{tpu_custom_call.1} parent=1 // pred_check
      _
    $region27: #{tpu_custom_call.1} parent=1 // pred_check_branch
      %420 = sbr.rel (0) target = $region29
    $region28: #{tpu_custom_call.1} parent=1 // pred_region
      %421 = dma.done [#allocation5], 128
    $region29: #{tpu_custom_call.1} parent=1 // pred_fallthru
      _
    %422 = vsyncpa [#allocation4], 1
    %423 = vsyncpa [#allocation7], 1
    %424 = vsyncpa [#allocation5], 1

</llo_original>
